<compile_context>
chip_gen: v6e
topology: v6e:2x2x1
jax: 0.10.0
libtpu: 0.0.40
codegen_flags: <defaults>
</compile_context>

<pallas_src>
import functools

import jax
import jax.numpy as jnp
from jax.experimental import pallas as pl
from jax.experimental.pallas import tpu as pltpu


# ----------------------------------------------------------------------------
# helpers
# ----------------------------------------------------------------------------
def _tile(dim, target, mult):
    """Largest block size <= target that divides `dim` and is a multiple of
    `mult` (or the full dim when the dim is small / indivisible)."""
    if dim <= target:
        return dim
    t = (target // mult) * mult
    while t >= mult:
        if dim % t == 0:
            return t
        t -= mult
    return dim  # fallback: single block


def _parallel(n):
    return pltpu.CompilerParams(dimension_semantics=("parallel",) * n)


# ----------------------------------------------------------------------------
# LayerNorm over rows of a 2D [M, D] tensor (used for the optional pre-LN)
# ----------------------------------------------------------------------------
def _ln_kernel(x_ref, g_ref, b_ref, o_ref, *, eps):
    x = x_ref[...].astype(jnp.float32)                       # [tm, D]
    mu = jnp.mean(x, axis=-1, keepdims=True)
    var = jnp.mean(jnp.square(x - mu), axis=-1, keepdims=True)
    y = (x - mu) * jax.lax.rsqrt(var + eps)
    o_ref[...] = (y * g_ref[...].astype(jnp.float32)
                  + b_ref[...].astype(jnp.float32)).astype(o_ref.dtype)


def layernorm2d(x2d, gamma, beta, eps=1e-5, tm_target=512):
    M, D = x2d.shape
    tm = _tile(M, tm_target, 8)
    return pl.pallas_call(
        functools.partial(_ln_kernel, eps=eps),
        out_shape=jax.ShapeDtypeStruct((M, D), x2d.dtype),
        grid=(M // tm,),
        in_specs=[pl.BlockSpec((tm, D), lambda i: (i, 0)),
                  pl.BlockSpec((1, D), lambda i: (0, 0)),
                  pl.BlockSpec((1, D), lambda i: (0, 0))],
        out_specs=pl.BlockSpec((tm, D), lambda i: (i, 0)),
        compiler_params=_parallel(1),
    )(x2d, gamma.reshape(1, D), beta.reshape(1, D))


# ----------------------------------------------------------------------------
# Fused multi-output projection: one activation read, N matmuls (QKV fusion)
# ----------------------------------------------------------------------------
def _multi_linear_kernel(*refs, n_out):
    x_ref = refs[0]
    w_refs = refs[1:1 + n_out]
    b_refs = refs[1 + n_out:1 + 2 * n_out]
    o_refs = refs[1 + 2 * n_out:]
    x = x_ref[...].astype(jnp.bfloat16)                      # MXU input
    for w_ref, b_ref, o_ref in zip(w_refs, b_refs, o_refs):
        acc = jnp.dot(x, w_ref[...].astype(jnp.bfloat16),
                      preferred_element_type=jnp.float32)
        o_ref[...] = (acc + b_ref[...].astype(jnp.float32)).astype(o_ref.dtype)


def multi_linear(x2d, ws, bs, tm_target=256):
    """x2d:[M, Din]; ws[i]:[Din, Douti]; bs[i]:[Douti] -> tuple of [M, Douti]."""
    n = len(ws)
    M, Din = x2d.shape
    tm = _tile(M, tm_target, 8)
    out_shape = tuple(jax.ShapeDtypeStruct((M, w.shape[1]), x2d.dtype) for w in ws)
    in_specs = [pl.BlockSpec((tm, Din), lambda i: (i, 0))]
    in_specs += [pl.BlockSpec(tuple(w.shape), lambda i: (0, 0)) for w in ws]
    in_specs += [pl.BlockSpec((1, w.shape[1]), lambda i: (0, 0)) for w in ws]
    out_specs = tuple(pl.BlockSpec((tm, w.shape[1]), lambda i: (i, 0)) for w in ws)
    return pl.pallas_call(
        functools.partial(_multi_linear_kernel, n_out=n),
        out_shape=out_shape,
        grid=(M // tm,),
        in_specs=in_specs,
        out_specs=out_specs,
        compiler_params=_parallel(1),
    )(x2d, *ws, *[b.reshape(1, -1) for b in bs])


# ----------------------------------------------------------------------------
# Tiled linear (post-projector): grid over (M tiles, N tiles)
# ----------------------------------------------------------------------------
def _linear_kernel(x_ref, w_ref, b_ref, o_ref):
    x = x_ref[...].astype(jnp.bfloat16)
    acc = jnp.dot(x, w_ref[...].astype(jnp.bfloat16),
                  preferred_element_type=jnp.float32)
    o_ref[...] = (acc + b_ref[...].astype(jnp.float32)).astype(o_ref.dtype)


def linear_tiled(x2d, w, b, tm_target=256, tn_target=512):
    M, Din = x2d.shape
    Dout = w.shape[1]
    tm = _tile(M, tm_target, 8)
    tn = _tile(Dout, tn_target, 128)
    return pl.pallas_call(
        _linear_kernel,
        out_shape=jax.ShapeDtypeStruct((M, Dout), x2d.dtype),
        grid=(M // tm, Dout // tn),
        in_specs=[pl.BlockSpec((tm, Din), lambda i, j: (i, 0)),
                  pl.BlockSpec((Din, tn), lambda i, j: (0, j)),
                  pl.BlockSpec((1, tn), lambda i, j: (0, j))],
        out_specs=pl.BlockSpec((tm, tn), lambda i, j: (i, j)),
        compiler_params=_parallel(2),
    )(x2d, w, b.reshape(1, Dout))


# ----------------------------------------------------------------------------
# Multi-head attention: all heads of one batch element per grid step
# ----------------------------------------------------------------------------
def _attn_kernel(q_ref, k_ref, v_ref, o_ref, *, num_heads, scale):
    q = q_ref[0]                                             # [Nq, H] f32
    k = k_ref[0]                                             # [S,  H]
    v = v_ref[0]
    hd = q.shape[-1] // num_heads
    outs = []
    for h in range(num_heads):                               # static unroll
        sl = slice(h * hd, (h + 1) * hd)
        qh = q[:, sl].astype(jnp.bfloat16)
        kh = k[:, sl].astype(jnp.bfloat16)
        vh = v[:, sl].astype(jnp.bfloat16)
        # scores: contract the head dim of k directly (no explicit k.T)
        s = jax.lax.dot_general(qh, kh, (((1,), (1,)), ((), ())),
                                preferred_element_type=jnp.float32) * scale
        m = jnp.max(s, axis=-1, keepdims=True)
        p = jnp.exp(s - m)
        denom = jnp.sum(p, axis=-1, keepdims=True)
        p = p * pl.reciprocal(denom, approx=True)            # EUP, off the VPU
        outs.append(jnp.dot(p.astype(jnp.bfloat16), vh,
                            preferred_element_type=jnp.float32))
    # lane-dense [Nq, H] store
    o_ref[0] = jnp.concatenate(outs, axis=-1).astype(o_ref.dtype)


def attention(q, k, v, num_heads):
    """q:[B, Nq, H], k,v:[B, S, H] -> [B, Nq, H]."""
    B, Nq, H = q.shape
    _, S, _ = k.shape
    hd = H // num_heads
    scale = 1.0 / float(hd) ** 0.5
    return pl.pallas_call(
        functools.partial(_attn_kernel, num_heads=num_heads, scale=scale),
        out_shape=jax.ShapeDtypeStruct((B, Nq, H), q.dtype),
        grid=(B,),
        in_specs=[pl.BlockSpec((1, Nq, H), lambda i: (i, 0, 0)),
                  pl.BlockSpec((1, S, H), lambda i: (i, 0, 0)),
                  pl.BlockSpec((1, S, H), lambda i: (i, 0, 0))],
        out_specs=pl.BlockSpec((1, Nq, H), lambda i: (i, 0, 0)),
        compiler_params=_parallel(1),
    )(q, k, v)


# ----------------------------------------------------------------------------
# Fused: attention-output projection + residual add + LayerNorm
# ----------------------------------------------------------------------------
def _proj_res_ln_kernel(x_ref, w_ref, b_ref, r_ref, g_ref, be_ref, o_ref, *, eps):
    x = x_ref[...].astype(jnp.bfloat16)
    y = jnp.dot(x, w_ref[...].astype(jnp.bfloat16),
                preferred_element_type=jnp.float32)
    y = y + b_ref[...].astype(jnp.float32) + r_ref[...].astype(jnp.float32)
    mu = jnp.mean(y, axis=-1, keepdims=True)
    var = jnp.mean(jnp.square(y - mu), axis=-1, keepdims=True)
    y = (y - mu) * jax.lax.rsqrt(var + eps)
    o_ref[...] = (y * g_ref[...].astype(jnp.float32)
                  + be_ref[...].astype(jnp.float32)).astype(o_ref.dtype)


def proj_residual_layernorm(x2d, w, b, res2d, gamma, beta, eps=1e-5, tm_target=256):
    M, H = x2d.shape
    Dout = w.shape[1]
    tm = _tile(M, tm_target, 8)
    return pl.pallas_call(
        functools.partial(_proj_res_ln_kernel, eps=eps),
        out_shape=jax.ShapeDtypeStruct((M, Dout), x2d.dtype),
        grid=(M // tm,),
        in_specs=[pl.BlockSpec((tm, H), lambda i: (i, 0)),
                  pl.BlockSpec((H, Dout), lambda i: (0, 0)),
                  pl.BlockSpec((1, Dout), lambda i: (0, 0)),
                  pl.BlockSpec((tm, Dout), lambda i: (i, 0)),
                  pl.BlockSpec((1, Dout), lambda i: (0, 0)),
                  pl.BlockSpec((1, Dout), lambda i: (0, 0))],
        out_specs=pl.BlockSpec((tm, Dout), lambda i: (i, 0)),
        compiler_params=_parallel(1),
    )(x2d, w, b.reshape(1, Dout), res2d, gamma.reshape(1, Dout), beta.reshape(1, Dout))


# ----------------------------------------------------------------------------
# Fused FFN (matmul + GELU + matmul, F-tiled) + residual + LayerNorm
# ----------------------------------------------------------------------------
def _ffn_res_ln_kernel(x_ref, w1_ref, b1_ref, w2_ref, b2_ref, r_ref, g_ref, be_ref,
                       o_ref, acc_ref, *, eps):
    f_idx = pl.program_id(1)

    @pl.when(f_idx == 0)
    def _():
        acc_ref[...] = jnp.zeros_like(acc_ref)

    x = x_ref[...].astype(jnp.bfloat16)                                  # [tm, H]
    h = jnp.dot(x, w1_ref[...].astype(jnp.bfloat16),
                preferred_element_type=jnp.float32)                      # [tm, tf]
    h = h + b1_ref[...].astype(jnp.float32)
    # TODO(synk): switch to exact erf GELU (approximate=False) for bit-parity
    # with torch.nn.GELU once verified to lower on the target Mosaic build.
    h = jax.nn.gelu(h, approximate=True)
    acc_ref[...] += jnp.dot(h.astype(jnp.bfloat16), w2_ref[...].astype(jnp.bfloat16),
                            preferred_element_type=jnp.float32)          # [tm, H]

    @pl.when(f_idx == pl.num_programs(1) - 1)
    def _():
        y = acc_ref[...] + b2_ref[...].astype(jnp.float32) + r_ref[...].astype(jnp.float32)
        mu = jnp.mean(y, axis=-1, keepdims=True)
        var = jnp.mean(jnp.square(y - mu), axis=-1, keepdims=True)
        y = (y - mu) * jax.lax.rsqrt(var + eps)
        o_ref[...] = (y * g_ref[...].astype(jnp.float32)
                      + be_ref[...].astype(jnp.float32)).astype(o_ref.dtype)


def ffn_residual_layernorm(x2d, w1, b1, w2, b2, res2d, gamma, beta, eps=1e-5,
                           tm_target=256, tf_target=512):
    M, H = x2d.shape
    F = w1.shape[1]
    tm = _tile(M, tm_target, 8)
    tf = _tile(F, tf_target, 128)
    return pl.pallas_call(
        functools.partial(_ffn_res_ln_kernel, eps=eps),
        out_shape=jax.ShapeDtypeStruct((M, H), x2d.dtype),
        grid=(M // tm, F // tf),
        in_specs=[
            pl.BlockSpec((tm, H), lambda i, f: (i, 0)),    # x
            pl.BlockSpec((H, tf), lambda i, f: (0, f)),    # w1 tile
            pl.BlockSpec((1, tf), lambda i, f: (0, f)),    # b1 tile
            pl.BlockSpec((tf, H), lambda i, f: (f, 0)),    # w2 tile
            pl.BlockSpec((1, H), lambda i, f: (0, 0)),     # b2
            pl.BlockSpec((tm, H), lambda i, f: (i, 0)),    # residual
            pl.BlockSpec((1, H), lambda i, f: (0, 0)),     # gamma
            pl.BlockSpec((1, H), lambda i, f: (0, 0)),     # beta
        ],
        out_specs=pl.BlockSpec((tm, H), lambda i, f: (i, 0)),
        scratch_shapes=[pltpu.VMEM((tm, H), jnp.float32)],
        compiler_params=pltpu.CompilerParams(
            dimension_semantics=("parallel", "arbitrary")),
    )(x2d, w1, b1.reshape(1, F), w2, b2.reshape(1, H), res2d,
      gamma.reshape(1, H), beta.reshape(1, H))


# ----------------------------------------------------------------------------
# Parameter init (deterministic, synthetic).  Matmul weights stored in bf16.
# ----------------------------------------------------------------------------
def _w(key, shape, std=0.02, dtype=jnp.bfloat16):
    return (jax.random.normal(key, shape, jnp.float32) * std).astype(dtype)


def init_qformer_params(key, feat_dim, hidden, num_query, ffn_dim):
    ks = jax.random.split(key, 11)
    z = lambda d: jnp.zeros((d,), jnp.float32)
    o = lambda d: jnp.ones((d,), jnp.float32)
    return {
        "query_tokens": _w(ks[0], (num_query, hidden), dtype=jnp.float32),
        "self_attn": {
            "wq": _w(ks[1], (hidden, hidden)), "bq": z(hidden),
            "wk": _w(ks[2], (hidden, hidden)), "bk": z(hidden),
            "wv": _w(ks[3], (hidden, hidden)), "bv": z(hidden),
            "wo": _w(ks[4], (hidden, hidden)), "bo": z(hidden),
        },
        "ln1_g": o(hidden), "ln1_b": z(hidden),
        "cross_attn": {
            "wq": _w(ks[5], (hidden, hidden)),   "bq": z(hidden),
            "wk": _w(ks[6], (feat_dim, hidden)), "bk": z(hidden),
            "wv": _w(ks[7], (feat_dim, hidden)), "bv": z(hidden),
            "wo": _w(ks[8], (hidden, hidden)),   "bo": z(hidden),
        },
        "ln2_g": o(hidden), "ln2_b": z(hidden),
        "ffn": {
            "w1": _w(ks[9], (hidden, ffn_dim)),  "b1": z(ffn_dim),
            "w2": _w(ks[10], (ffn_dim, hidden)), "b2": z(hidden),
        },
        "ln3_g": o(hidden), "ln3_b": z(hidden),
    }


def qformer_forward(params, x, num_heads):
    """SequenceGenericQFormer (single representative transformer block:
    self-attn over learnable query tokens, cross-attn to encoder features, FFN).
    x:[B, S, feat_dim] -> [B, num_query, hidden]."""
    # TODO(synk): the real BLIP-2 QFormer stacks many BERT layers and can load
    # a checkpoint (qformer_model); a single representative block is used here.
    B, S, Dfeat = x.shape
    qt = params["query_tokens"]                               # [Nq, H] f32
    Nq, H = qt.shape
    q2d = jnp.broadcast_to(qt[None], (B, Nq, H)).astype(x.dtype).reshape(B * Nq, H)

    # --- self-attention (fused QKV projection, fused wo+residual+LN) ---
    sa = params["self_attn"]
    qp, kp, vp = multi_linear(q2d, [sa["wq"], sa["wk"], sa["wv"]],
                              [sa["bq"], sa["bk"], sa["bv"]])
    att = attention(qp.reshape(B, Nq, H), kp.reshape(B, Nq, H),
                    vp.reshape(B, Nq, H), num_heads)
    q2d = proj_residual_layernorm(att.reshape(B * Nq, H), sa["wo"], sa["bo"],
                                  q2d, params["ln1_g"], params["ln1_b"])

    # --- cross-attention (fused KV projection of encoder features) ---
    ca = params["cross_attn"]
    (qp,) = multi_linear(q2d, [ca["wq"]], [ca["bq"]])
    x2d = x.reshape(B * S, Dfeat)
    kp, vp = multi_linear(x2d, [ca["wk"], ca["wv"]], [ca["bk"], ca["bv"]])
    att = attention(qp.reshape(B, Nq, H), kp.reshape(B, S, H),
                    vp.reshape(B, S, H), num_heads)
    q2d = proj_residual_layernorm(att.reshape(B * Nq, H), ca["wo"], ca["bo"],
                                  q2d, params["ln2_g"], params["ln2_b"])

    # --- FFN + residual + LN (single fused, F-tiled kernel) ---
    ff = params["ffn"]
    q2d = ffn_residual_layernorm(q2d, ff["w1"], ff["b1"], ff["w2"], ff["b2"],
                                 q2d, params["ln3_g"], params["ln3_b"])
    return q2d.reshape(B, Nq, H)


# ----------------------------------------------------------------------------
# ImageBindJoiner
# ----------------------------------------------------------------------------
class ImageBindJoinerPallas:
    def __init__(self, cfg, output_dim, key, num_heads=2):
        cfg = dict(cfg)
        self.share_key = cfg.pop("share_key", None)
        self.use_pre_ln = cfg.pop("use_pre_ln", False)
        self.share_joiner = isinstance(self.share_key, str)
        if self.share_joiner:
            assert self.share_key in cfg, "The modality key to share does not exist."
        self.num_heads = num_heads
        self.params = {}

        keys = jax.random.split(key, len(cfg))
        for k_i, (modality, mcfg) in zip(keys, cfg.items()):
            feat_dim = mcfg.get("feat_dim", 1024)
            hidden = mcfg.get("qformer_hidden", mcfg.get("post_dims", (768,))[0])
            num_query = mcfg.get("num_query_token", 32)
            ffn_dim = mcfg.get("ffn_dim", 4 * hidden)
            post_dims = tuple(mcfg.get("post_dims", (hidden,))) + (output_dim,)
            k1, k2 = jax.random.split(k_i)
            # NOTE: freeze_qformer / freeze_post / qformer_model are training-time
            # flags (requires_grad / checkpoint load) — no effect on forward math.
            # TODO(synk): multi-layer post projector chains (len(post_dims) > 2)
            # are collapsed to the final Linear here.
            self.params[modality] = {
                "pre_ln": {"g": jnp.ones((feat_dim,), jnp.float32),
                           "b": jnp.zeros((feat_dim,), jnp.float32)},
                # pre_dims defaults to () -> identity pre-projector.
                "qformer": init_qformer_params(k1, feat_dim, hidden, num_query, ffn_dim),
                "post": {"w": _w(k2, (post_dims[-2], post_dims[-1])),
                         "b": jnp.zeros((post_dims[-1],), jnp.float32)},
            }

    def __call__(self, inputs):
        outputs = {}
        for modality_key, modality_value in inputs.items():
            if modality_value is None:
                continue
            model_key = self.share_key if self.share_joiner else modality_key
            val = modality_value
            B, S, Dfeat = val.shape
            if self.use_pre_ln:
                pln = self.params[modality_key]["pre_ln"]
                val = layernorm2d(val.reshape(B * S, Dfeat),
                                  pln["g"], pln["b"]).reshape(B, S, Dfeat)
            # pre-projector: pre_dims=() -> identity
            p = self.params[model_key]
            q = qformer_forward(p["qformer"], val, self.num_heads)
            Bq, Nq, H = q.shape
            y = linear_tiled(q.reshape(Bq * Nq, H), p["post"]["w"], p["post"]["b"])
            outputs[modality_key] = y.reshape(Bq, Nq, -1)
        return outputs


# ----------------------------------------------------------------------------
# Demo
# ----------------------------------------------------------------------------
if __name__ == "__main__":
    key = jax.random.PRNGKey(0)
    k_params, k_vis, k_aud = jax.random.split(key, 3)

    # small synthetic config (real defaults would be feat_dim=1024, hidden=768,
    # num_query_token=32, output_dim e.g. 4096)
    B, S, FEAT, HID, NQ, FFN_DIM, OUT = 2, 8, 32, 32, 8, 64, 16
    cfg = {
        "share_key": "vision",
        "use_pre_ln": True,
        "vision": {"feat_dim": FEAT, "qformer_hidden": HID, "num_query_token": NQ,
                   "ffn_dim": FFN_DIM, "post_dims": (HID,),
                   "freeze_qformer": True, "freeze_post": False, "qformer_model": ""},
        "audio": {"feat_dim": FEAT, "qformer_hidden": HID, "num_query_token": NQ,
                  "ffn_dim": FFN_DIM, "post_dims": (HID,),
                  "freeze_qformer": True, "freeze_post": False, "qformer_model": ""},
    }

    joiner = ImageBindJoinerPallas(cfg, output_dim=OUT, key=k_params, num_heads=2)

    inputs = {
        "vision": jax.random.normal(k_vis, (B, S, FEAT), jnp.float32),
        "audio": jax.random.normal(k_aud, (B, S, FEAT), jnp.float32),
    }

    outputs = joiner(inputs)
    outputs = jax.tree_util.tree_map(jax.block_until_ready, outputs)

    assert outputs["vision"].shape == (B, NQ, OUT)
    assert outputs["audio"].shape == (B, NQ, OUT)
    assert all(bool(jnp.all(jnp.isfinite(v))) for v in outputs.values())
    print("KERNEL_OK")
</pallas_src>

<mosaic_0001>
module attributes {stable_mosaic.version = 11 : i64} {
  func.func @_ln_kernel(%arg0: i32, %arg1: memref<16x32xf32, #tpu.memory_space<vmem>>, %arg2: memref<1x32xf32, #tpu.memory_space<vmem>>, %arg3: memref<1x32xf32, #tpu.memory_space<vmem>>, %arg4: memref<16x32xf32, #tpu.memory_space<vmem>>) attributes {dimension_semantics = [#tpu.dimension_semantics<parallel>], iteration_bounds = array<i64: 1>, scalar_prefetch = 0 : i64, scratch_operands = 0 : i64, tpu.core_type = #tpu.core_type<tc>, window_params = [{transform_indices = @transform_0, window_bounds = array<i64: 16, 32>}, {pipeline_mode = #tpu.pipeline_mode<synchronous>, transform_indices = @transform_1, window_bounds = array<i64: 1, 32>}, {pipeline_mode = #tpu.pipeline_mode<synchronous>, transform_indices = @transform_2, window_bounds = array<i64: 1, 32>}, {transform_indices = @transform_3, window_bounds = array<i64: 16, 32>}]} {
    %c0 = arith.constant 0 : index
    %c0_0 = arith.constant 0 : index
    %0 = vector.load %arg1[%c0, %c0_0] : memref<16x32xf32, #tpu.memory_space<vmem>>, vector<16x32xf32>
    %cst = arith.constant dense<0.000000e+00> : vector<16xf32>
    %1 = vector.multi_reduction <add>, %0, %cst [1] : vector<16x32xf32> to vector<16xf32>
    %2 = vector.shape_cast %1 : vector<16xf32> to vector<16x1xf32>
    %cst_1 = arith.constant 3.200000e+01 : f32
    %3 = vector.broadcast %cst_1 : f32 to vector<16x1xf32>
    %4 = arith.divf %2, %3 : vector<16x1xf32>
    %5 = vector.broadcast %4 : vector<16x1xf32> to vector<16x32xf32>
    %6 = arith.subf %0, %5 : vector<16x32xf32>
    %7 = arith.mulf %6, %6 : vector<16x32xf32>
    %cst_2 = arith.constant dense<0.000000e+00> : vector<16xf32>
    %8 = vector.multi_reduction <add>, %7, %cst_2 [1] : vector<16x32xf32> to vector<16xf32>
    %9 = vector.shape_cast %8 : vector<16xf32> to vector<16x1xf32>
    %cst_3 = arith.constant 3.200000e+01 : f32
    %10 = vector.broadcast %cst_3 : f32 to vector<16x1xf32>
    %11 = arith.divf %9, %10 : vector<16x1xf32>
    %12 = vector.broadcast %4 : vector<16x1xf32> to vector<16x32xf32>
    %13 = arith.subf %0, %12 : vector<16x32xf32>
    %cst_4 = arith.constant 9.99999974E-6 : f32
    %14 = vector.broadcast %cst_4 : f32 to vector<16x1xf32>
    %15 = arith.addf %11, %14 : vector<16x1xf32>
    %16 = math.rsqrt %15 : vector<16x1xf32>
    %17 = vector.broadcast %16 : vector<16x1xf32> to vector<16x32xf32>
    %18 = arith.mulf %13, %17 : vector<16x32xf32>
    %c0_5 = arith.constant 0 : index
    %c0_6 = arith.constant 0 : index
    %19 = vector.load %arg2[%c0_5, %c0_6] : memref<1x32xf32, #tpu.memory_space<vmem>>, vector<1x32xf32>
    %20 = vector.broadcast %19 : vector<1x32xf32> to vector<16x32xf32>
    %21 = arith.mulf %18, %20 : vector<16x32xf32>
    %c0_7 = arith.constant 0 : index
    %c0_8 = arith.constant 0 : index
    %22 = vector.load %arg3[%c0_7, %c0_8] : memref<1x32xf32, #tpu.memory_space<vmem>>, vector<1x32xf32>
    %23 = vector.broadcast %22 : vector<1x32xf32> to vector<16x32xf32>
    %24 = arith.addf %21, %23 : vector<16x32xf32>
    %c0_9 = arith.constant 0 : index
    %c0_10 = arith.constant 0 : index
    %25 = vector.load %arg4[%c0_9, %c0_10] : memref<16x32xf32, #tpu.memory_space<vmem>>, vector<16x32xf32>
    tpu.vector_store %arg4[%c0_9, %c0_10], %24 {strides = array<i32>} : memref<16x32xf32, #tpu.memory_space<vmem>>, vector<16x32xf32>,
    return
  }
  func.func @transform_0(%arg0: i32) -> (i32, i32) {
    %c0_i32 = arith.constant 0 : i32
    %c0_i32_0 = arith.constant 0 : i32
    return %arg0, %c0_i32 : i32, i32
  }
  func.func @transform_1(%arg0: i32) -> (i32, i32) {
    %c0_i32 = arith.constant 0 : i32
    %c0_i32_0 = arith.constant 0 : i32
    %c0_i32_1 = arith.constant 0 : i32
    return %c0_i32, %c0_i32_0 : i32, i32
  }
  func.func @transform_2(%arg0: i32) -> (i32, i32) {
    %c0_i32 = arith.constant 0 : i32
    %c0_i32_0 = arith.constant 0 : i32
    %c0_i32_1 = arith.constant 0 : i32
    return %c0_i32, %c0_i32_0 : i32, i32
  }
  func.func @transform_3(%arg0: i32) -> (i32, i32) {
    %c0_i32 = arith.constant 0 : i32
    %c0_i32_0 = arith.constant 0 : i32
    return %arg0, %c0_i32 : i32, i32
  }
}

</mosaic_0001>

<llo_original>
// kernel: tpu_custom_call.1
$region0: #{tpu_custom_call.1}
  #allocation0 [shape = 'u32[]', space=smem, size = 0x4, offset = 0x4, fixed_abs, tag = 'smem constant byte address 0x4 - core index']
  #allocation1 [shape = 'u32[144,128]{1,0:T(1,128)}', space=vmem, size = 0x12000, scoped, tag = 'internal scratch']
  %s0 = inlined_call_operand.hbm [shape: f32[16,32], index: 0, kind: input, shape index: {}]
  %s1 = inlined_call_operand.vmem [shape: f32[1,32], index: 1, kind: input, shape index: {}]
  %s2 = inlined_call_operand.vmem [shape: f32[1,32], index: 2, kind: input, shape index: {}]
  %s3 = inlined_call_operand.hbm [shape: f32[16,32], index: 3, kind: output, shape index: {}]
  %s4 = sld [smem:[#allocation0]]
  $region26: #{tpu_custom_call.1} parent=0
    _
  %s6 = ssub.s32 1, %s4
  %s7 = scalar_select 0, %s6, %s4
  $region1: #{tpu_custom_call.1} parent=0
    #allocation2 [shape = 'u8[8192]{0}', space=vmem, size = 0x2000, scoped, tag = 'input window, operand 0, single buffered']
    #allocation3 [shape = 's32[1]{0}', space=sflag, size = 0x4, scoped, tag = 'scoped memory for tpu_custom_call.1']
    #allocation4 [shape = 's32[1]{0}', space=sflag, size = 0x4, scoped, tag = 'scoped memory for tpu_custom_call.1']
    #allocation5 [shape = 'u8[8192]{0}', space=vmem, size = 0x2000, scoped, tag = 'output window, operand 0, single buffered']
    %8 = vsyncpa [#allocation3], 0
    %9 = vsyncpa [#allocation4], 0
    // Predicated region
    $region2: #{tpu_custom_call.1} parent=1 // pred_check
      _
    $region3: #{tpu_custom_call.1} parent=1 // pred_check_branch
      %11 = sbr.rel (0) target = $region5
    $region4: #{tpu_custom_call.1} parent=1 // pred_region
      %s13 = ssub.s32 256, 256
      %14 = vsyncadd [#allocation3], %s13
      %s15 = sshll.u32 [#allocation2], 4
      %s16 = int_to_ptr.vmem [resolvable:$true] %s15
      %21 = dma.hbm_to_vmem [thread:$0]  %s0, 256, %s16, [#allocation3], 128, 128, 8
    $region5: #{tpu_custom_call.1} parent=1 // pred_fallthru
      _
    // Predicated region
    $region6: #{tpu_custom_call.1} parent=1 // pred_check
      _
    $region7: #{tpu_custom_call.1} parent=1 // pred_check_branch
      %23 = sbr.rel (0) target = $region9
    $region8: #{tpu_custom_call.1} parent=1 // pred_region
      _
    $region9: #{tpu_custom_call.1} parent=1 // pred_fallthru
      _
    // Predicated region
    $region10: #{tpu_custom_call.1} parent=1 // pred_check
      _
    $region11: #{tpu_custom_call.1} parent=1 // pred_check_branch
      %25 = sbr.rel (0) target = $region13
    $region12: #{tpu_custom_call.1} parent=1 // pred_region
      _
    $region13: #{tpu_custom_call.1} parent=1 // pred_fallthru
      _
    // Predicated region
    $region14: #{tpu_custom_call.1} parent=1 // pred_check
      _
    $region15: #{tpu_custom_call.1} parent=1 // pred_check_branch
      %27 = sbr.rel (0) target = $region17
    $region16: #{tpu_custom_call.1} parent=1 // pred_region
      %28 = dma.done [#allocation3], 256
    $region17: #{tpu_custom_call.1} parent=1 // pred_fallthru
      _
    %v29 = vld [vmem:[#allocation2] sm:$0xff]
    %v30 = vld [vmem:[#allocation2 + $0x8] sm:$0xff]
    %vm31 = vcmask 261120
    %v32 = vsel %vm31, %v29, 0.0
    %33 = vadd.xlane.f32.xlu0 %v32
    %v34 = vpop.xlane.xlu0 %33
    %v35 = vsel %vm31, %v30, 0.0
    %36 = vadd.xlane.f32.xlu0 %v35
    %v37 = vpop.xlane.xlu0 %36
    %v38 = vrcp.pop 32.0
    %v39 = vmul.f32 %v34, %v38
    %v40 = vmul.f32 %v37, %v38
    %v41 = vsub.f32 %v29, %v39
    %v42 = vsub.f32 %v30, %v40
    %v43 = vmul.f32 %v41, %v41
    %v44 = vmul.f32 %v42, %v42
    %v45 = vsel %vm31, %v43, 0.0
    %46 = vadd.xlane.f32.xlu0 %v45
    %v47 = vpop.xlane.xlu0 %46
    %v48 = vsel %vm31, %v44, 0.0
    %49 = vadd.xlane.f32.xlu0 %v48
    %v50 = vpop.xlane.xlu0 %49
    %v51 = vmul.f32 %v47, %v38
    %v52 = vmul.f32 %v50, %v38
    %v53 = vadd.f32 %v51, 1e-05
    %v54 = vadd.f32 %v52, 1e-05
    %v55 = vrsqrt.pop %v53
    %v56 = vrsqrt.pop %v54
    %v57 = vmul.f32 %v41, %v55
    %v58 = vmul.f32 %v42, %v56
    %v59 = vld [vmem:[%s1] sm:$0x1]
    %v61 = vlaneseq
    %v62 = vshrl.u32 %v61, 7
    %v63 = vsub.s32 0, %v62
    %v64 = vrot.slane %v59, %v63
    %v66 = vmul.f32 %v57, %v64
    %v67 = vmul.f32 %v58, %v64
    %v68 = vld [vmem:[%s2] sm:$0x1]
    %v70 = vlaneseq
    %v71 = vshrl.u32 %v70, 7
    %v72 = vsub.s32 0, %v71
    %v73 = vrot.slane %v68, %v72
    %v75 = vadd.f32 %v66, %v73
    %v76 = vadd.f32 %v67, %v73
    %77 = vst.msk [vmem:[#allocation5] sm:$0xff] %vm31, %v75
    %78 = vst.msk [vmem:[#allocation5 + $0x8] sm:$0xff] %vm31, %v76
    // Predicated region
    $region18: #{tpu_custom_call.1} parent=1 // pred_check
      _
    $region19: #{tpu_custom_call.1} parent=1 // pred_check_branch
      %80 = sbr.rel (0) target = $region21
    $region20: #{tpu_custom_call.1} parent=1 // pred_region
      %s82 = ssub.s32 256, 256
      %83 = vsyncadd [#allocation4], %s82
      %s84 = sshll.u32 [#allocation5], 4
      %s85 = int_to_ptr.vmem [resolvable:$true] %s84
      %90 = dma.vmem_to_hbm [thread:$0]  %s85, 256, %s3, [#allocation4], 128, 128, 8
    $region21: #{tpu_custom_call.1} parent=1 // pred_fallthru
      _
    // Predicated region
    $region22: #{tpu_custom_call.1} parent=1 // pred_check
      _
    $region23: #{tpu_custom_call.1} parent=1 // pred_check_branch
      %92 = sbr.rel (0) target = $region25
    $region24: #{tpu_custom_call.1} parent=1 // pred_region
      %93 = dma.done [#allocation4], 256
    $region25: #{tpu_custom_call.1} parent=1 // pred_fallthru
      _
    %94 = vsyncpa [#allocation3], 1
    %95 = vsyncpa [#allocation4], 1

</llo_original>
